<compile_context>
chip_gen: v7x
topology: tpu7x:2x2x1
jax: 0.10.0
libtpu: 0.0.40
codegen_flags: <defaults>
</compile_context>

<pallas_src>
import math
from functools import partial

import jax
import jax.numpy as jnp
from jax import lax
from jax.experimental import pallas as pl
from jax.experimental.pallas import tpu as pltpu


def _round_up(x, m):
    return (x + m - 1) // m * m


# ---------------------------------------------------------------------------
# Host-side hardware bookkeeping (cached; falls back to v7x-safe defaults).
# ---------------------------------------------------------------------------
_DEFAULT_VMEM_CAP = 64 * 1024 * 1024  # v7x per-TensorCore VMEM (smallest gen)
_VMEM_CAP = None


def _vmem_capacity_bytes():
    global _VMEM_CAP
    if _VMEM_CAP is None:
        try:
            cap = int(getattr(pltpu.get_tpu_info(), "vmem_capacity_bytes", 0))
        except Exception:
            cap = 0
        _VMEM_CAP = cap if cap > 0 else _DEFAULT_VMEM_CAP
    return _VMEM_CAP


def _vmem_limit_bytes():
    cap = _vmem_capacity_bytes()
    # Never request the full physical VMEM (v7x per-TC is only 64 MiB):
    # leave >= 16 MiB for compiler-internal scratch / spill space.
    return max(32 * 1024 * 1024, min(cap * 3 // 4, cap - 16 * 1024 * 1024))


def _default_row_tile():
    # 512 rows/tile on 128 MiB-VMEM chips (v5e/v6e), 256 on v7x (64 MiB).
    return 512 if _vmem_capacity_bytes() >= 96 * 1024 * 1024 else 256


# ---------------------------------------------------------------------------
# Tile selection
# ---------------------------------------------------------------------------
def _choose_row_tile(M, tm_max):
    """Row tile: multiple of 8, preferably an exact divisor of the sublane-
    rounded row count (no padded MXU work, output slice is a no-op) and small
    enough that the parallel row axis has >= 2 steps (2 TCs on v7x)."""
    M8 = _round_up(max(M, 1), 8)
    cap = tm_max if M8 <= 8 else min(tm_max, M8 // 2)
    cap = max(8, cap // 8 * 8)
    cap = min(cap, M8)
    best = 8
    for d in range(8, cap + 1, 8):
        if M8 % d == 0:
            best = d
    if best * 4 >= cap:          # good-enough exact divisor found
        return best, M8
    # Fall back to a padded last tile (divisors of M8 were all tiny).
    return cap, _round_up(M8, cap)


def _choose_hidden_tile(in_p, hid_p, out_p, tm, *, w_itemsize, x_itemsize,
                        out_itemsize, budget):
    """Largest hidden tile (multiple of 128, exact divisor of hid_p) whose
    VMEM footprint fits the budget.  Weights are single-buffered when the
    whole hidden dim fits in one tile (num_k == 1)."""

    def footprint(tk):
        num_k = hid_p // tk
        wbuf = 1 if num_k == 1 else 2                       # Buffered(1) vs default
        return (
            (in_p * tk + tk * out_p + tk) * w_itemsize * wbuf   # w1 / w2 / b1 blocks
            + out_p * 4                                          # b2 (single buffered)
            + tm * in_p * x_itemsize * 2                         # x tiles
            + tm * out_p * out_itemsize * 2                      # output tiles
            + tm * out_p * 4                                     # f32 accumulator
            + tm * tk * 4 * 2                                    # f32 GELU temporaries
        )

    best = 128
    for tk in range(128, hid_p + 1, 128):
        if hid_p % tk == 0 and footprint(tk) <= budget:
            best = tk
    # TODO(synk): if even tk=128 exceeds the budget (extremely large in/out
    # feature dims), additionally shrink the row tile tm.
    return best


# ---------------------------------------------------------------------------
# Kernel
# ---------------------------------------------------------------------------
def _mlp_kernel(x_ref, w1_ref, b1_ref, w2_ref, b2_ref, o_ref, acc_ref):
    """One (row-tile, hidden-tile) grid step of gelu(x@w1+b1)@w2 + b2."""
    k = pl.program_id(1)

    @pl.when(k == 0)
    def _():
        acc_ref[...] = jnp.zeros_like(acc_ref)

    # fc1 for this hidden block: MXU operands in native (bf16) dtype,
    # f32 accumulation via preferred_element_type.
    h = jnp.dot(x_ref[...], w1_ref[...], preferred_element_type=jnp.float32)
    h = h + b1_ref[...].astype(jnp.float32)

    # Exact GELU (matches torch.nn.GELU default), computed in f32.
    h = 0.5 * h * (1.0 + lax.erf(h * (1.0 / math.sqrt(2.0))))
    # dropout(p=0.0) is identity -> nothing to do.

    # fc2 partial product for this hidden block; accumulate in f32.
    h = h.astype(w2_ref.dtype)
    acc_ref[...] += jnp.dot(h, w2_ref[...], preferred_element_type=jnp.float32)

    @pl.when(k == pl.num_programs(1) - 1)
    def _():
        o_ref[...] = (acc_ref[...] + b2_ref[...].astype(jnp.float32)).astype(o_ref.dtype)


# ---------------------------------------------------------------------------
# Wrapper
# ---------------------------------------------------------------------------
@partial(jax.jit, static_argnames=("out_features", "tm", "use_bf16_matmul"))
def _mlp_forward_impl(x, w1p, b1p, w2p, b2p, *, out_features, tm, use_bf16_matmul):
    lead = x.shape[:-1]
    in_features = x.shape[-1]
    M = math.prod(lead) if lead else 1

    in_p, hid_p = w1p.shape
    out_p = w2p.shape[1]

    tm_eff, M_p = _choose_row_tile(M, tm)

    x_dtype = jnp.bfloat16 if use_bf16_matmul else x.dtype
    vmem_limit = _vmem_limit_bytes()
    tk = _choose_hidden_tile(
        in_p, hid_p, out_p, tm_eff,
        w_itemsize=jnp.dtype(w1p.dtype).itemsize,
        x_itemsize=jnp.dtype(x_dtype).itemsize,
        out_itemsize=jnp.dtype(x.dtype).itemsize,
        budget=int(vmem_limit * 0.85),
    )
    num_k = hid_p // tk

    # Only x is padded in the hot path (weights were pre-padded once).
    x2d = x.reshape(M, in_features).astype(x_dtype)
    x2d = jnp.pad(x2d, ((0, M_p - M), (0, in_p - in_features)))

    # Grid-invariant blocks are single-buffered: their index_map never
    # changes, so double-buffering only wastes VMEM.
    invariant = pl.Buffered(1)
    w_mode = invariant if num_k == 1 else None

    def spec(shape, index_map, mode=None):
        if mode is None:
            return pl.BlockSpec(shape, index_map)
        return pl.BlockSpec(shape, index_map, pipeline_mode=mode)

    out2d = pl.pallas_call(
        _mlp_kernel,
        out_shape=jax.ShapeDtypeStruct((M_p, out_p), x.dtype),
        grid_spec=pltpu.PrefetchScalarGridSpec(
            num_scalar_prefetch=0,
            grid=(M_p // tm_eff, num_k),
            in_specs=[
                spec((tm_eff, in_p), lambda i, k: (i, 0)),          # x row tile
                spec((in_p, tk), lambda i, k: (0, k), w_mode),      # w1 hidden block
                spec((1, tk), lambda i, k: (0, k), w_mode),         # b1 hidden block
                spec((tk, out_p), lambda i, k: (k, 0), w_mode),     # w2 hidden block
                spec((1, out_p), lambda i, k: (0, 0), invariant),   # b2 (invariant)
            ],
            out_specs=pl.BlockSpec((tm_eff, out_p), lambda i, k: (i, 0)),
            scratch_shapes=[pltpu.VMEM((tm_eff, out_p), jnp.float32)],
        ),
        compiler_params=pltpu.CompilerParams(
            dimension_semantics=("parallel", "arbitrary"),
            vmem_limit_bytes=vmem_limit,
        ),
    )(x2d, w1p, b1p, w2p, b2p)

    out = out2d[:M, :out_features]
    return out.reshape(lead + (out_features,))


def prepare_mlp_params(w1, b1, w2, b2, *, use_bf16_matmul=True):
    """Pad feature dims to lane multiples (128) and optionally cast the matmul
    operands to bf16 ONCE, outside the jitted forward, so the weights are not
    re-padded / re-written to HBM on every call."""
    in_features, hidden_features = w1.shape
    out_features = w2.shape[1]
    in_p = _round_up(in_features, 128)
    hid_p = _round_up(hidden_features, 128)
    out_p = _round_up(out_features, 128)

    w_dtype = jnp.bfloat16 if use_bf16_matmul else w1.dtype
    w1p = jnp.pad(w1, ((0, in_p - in_features), (0, hid_p - hidden_features))).astype(w_dtype)
    w2p = jnp.pad(w2, ((0, hid_p - hidden_features), (0, out_p - out_features))).astype(w_dtype)
    b1p = jnp.pad(b1.reshape(1, -1), ((0, 0), (0, hid_p - hidden_features)))
    b2p = jnp.pad(b2.reshape(1, -1), ((0, 0), (0, out_p - out_features)))

    return {
        "w1": w1p, "b1": b1p, "w2": w2p, "b2": b2p,
        "in_features": in_features,
        "out_features": out_features,
        "use_bf16_matmul": use_bf16_matmul,
    }


def mlp_forward(x, params, *, tm=None):
    """x: (..., in_features) -> (..., out_features)."""
    assert x.shape[-1] == params["in_features"]
    return _mlp_forward_impl(
        x, params["w1"], params["b1"], params["w2"], params["b2"],
        out_features=params["out_features"],
        tm=int(tm) if tm is not None else _default_row_tile(),
        use_bf16_matmul=params["use_bf16_matmul"],
    )


def init_mlp_params(key, in_features, hidden_features, out_features, dtype=jnp.float32):
    """Deterministic init mimicking nn.Linear (uniform(-1/sqrt(fan_in), 1/sqrt(fan_in)))."""
    k1, k2, k3, k4 = jax.random.split(key, 4)
    bound1 = 1.0 / math.sqrt(in_features)
    bound2 = 1.0 / math.sqrt(hidden_features)
    w1 = jax.random.uniform(k1, (in_features, hidden_features), dtype, -bound1, bound1)
    b1 = jax.random.uniform(k2, (1, hidden_features), dtype, -bound1, bound1)
    w2 = jax.random.uniform(k3, (hidden_features, out_features), dtype, -bound2, bound2)
    b2 = jax.random.uniform(k4, (1, out_features), dtype, -bound2, bound2)
    return w1, b1, w2, b2


def mlp_reference(x, w1, b1, w2, b2):
    """Pure-JAX f32 reference of the PyTorch forward (dropout p=0)."""
    h = x.astype(jnp.float32) @ w1.astype(jnp.float32) + b1.astype(jnp.float32)
    h = 0.5 * h * (1.0 + lax.erf(h / math.sqrt(2.0)))
    o = h @ w2.astype(jnp.float32) + b2.astype(jnp.float32)
    return o.astype(x.dtype)


if __name__ == "__main__":
    key = jax.random.PRNGKey(0)
    kx, kp = jax.random.split(key)

    # Small shapes consistent with the module: (batch, seq, features)
    B, N = 2, 8
    in_features, hidden_features, out_features = 32, 64, 32

    x = jax.random.normal(kx, (B, N, in_features), dtype=jnp.float32)
    w1, b1, w2, b2 = init_mlp_params(kp, in_features, hidden_features, out_features)
    ref = mlp_reference(x, w1, b1, w2, b2)

    # Full-precision path: exact parity with the f32 reference.
    params_f32 = prepare_mlp_params(w1, b1, w2, b2, use_bf16_matmul=False)
    out_f32 = jax.block_until_ready(mlp_forward(x, params_f32))
    assert out_f32.shape == (B, N, out_features)
    assert jnp.allclose(out_f32, ref, atol=1e-5, rtol=1e-5), "f32 path mismatch vs reference"

    # Default production path: bf16 MXU operands, f32 accumulation.
    params_bf16 = prepare_mlp_params(w1, b1, w2, b2)
    out_bf16 = jax.block_until_ready(mlp_forward(x, params_bf16))
    assert out_bf16.shape == (B, N, out_features)
    assert jnp.allclose(out_bf16, ref, atol=1e-1, rtol=1e-1), "bf16 path mismatch vs reference"

    print("KERNEL_OK")
</pallas_src>

<mosaic_0001>
module attributes {stable_mosaic.version = 11 : i64} {
  func.func @_mlp_kernel(%arg0: i32, %arg1: i32, %arg2: memref<8x128xf32, #tpu.memory_space<vmem>>, %arg3: memref<128x128xf32, #tpu.memory_space<vmem>>, %arg4: memref<1x128xf32, #tpu.memory_space<vmem>>, %arg5: memref<128x128xf32, #tpu.memory_space<vmem>>, %arg6: memref<1x128xf32, #tpu.memory_space<vmem>>, %arg7: memref<8x128xf32, #tpu.memory_space<vmem>>, %arg8: memref<8x128xf32, #tpu.memory_space<vmem>>) attributes {dimension_semantics = [#tpu.dimension_semantics<parallel>, #tpu.dimension_semantics<arbitrary>], iteration_bounds = array<i64: 2, 1>, scalar_prefetch = 0 : i64, scratch_operands = 1 : i64, tpu.core_type = #tpu.core_type<tc>, window_params = [{transform_indices = @transform_0, window_bounds = array<i64: 8, 128>}, {pipeline_mode = #tpu.pipeline_mode<synchronous>, transform_indices = @transform_1, window_bounds = array<i64: 128, 128>}, {pipeline_mode = #tpu.pipeline_mode<synchronous>, transform_indices = @transform_2, window_bounds = array<i64: 1, 128>}, {pipeline_mode = #tpu.pipeline_mode<synchronous>, transform_indices = @transform_3, window_bounds = array<i64: 128, 128>}, {pipeline_mode = #tpu.pipeline_mode<synchronous>, transform_indices = @transform_4, window_bounds = array<i64: 1, 128>}, {transform_indices = @transform_5, window_bounds = array<i64: 8, 128>}]} {
    %c0_i32 = arith.constant 0 : i32
    %0 = arith.cmpi eq, %arg1, %c0_i32 : i32
    %1 = arith.extui %0 : i1 to i32
    %c0_i32_0 = arith.constant 0 : i32
    %2 = arith.cmpi ne, %1, %c0_i32_0 : i32
    scf.if %2 {
      %cst_18 = arith.constant 0.000000e+00 : f32
      %25 = vector.broadcast %cst_18 : f32 to vector<8x128xf32>
      %c0_19 = arith.constant 0 : index
      %c0_20 = arith.constant 0 : index
      %26 = vector.load %arg8[%c0_19, %c0_20] : memref<8x128xf32, #tpu.memory_space<vmem>>, vector<8x128xf32>
      tpu.vector_store %arg8[%c0_19, %c0_20], %25 {strides = array<i32>} : memref<8x128xf32, #tpu.memory_space<vmem>>, vector<8x128xf32>,
    } else {
    }
    %c0 = arith.constant 0 : index
    %c0_1 = arith.constant 0 : index
    %3 = vector.load %arg2[%c0, %c0_1] : memref<8x128xf32, #tpu.memory_space<vmem>>, vector<8x128xf32>
    %c0_2 = arith.constant 0 : index
    %c0_3 = arith.constant 0 : index
    %4 = vector.load %arg3[%c0_2, %c0_3] : memref<128x128xf32, #tpu.memory_space<vmem>>, vector<128x128xf32>
    %cst = arith.constant dense<0.000000e+00> : vector<8x128xf32>
    %5 = tpu.matmul %3, %4, %cst {dimension_numbers = #tpu.dot_dimension_numbers<[1], [0], [0], [1], [0, 0, 1, 1], [], []>} : vector<8x128xf32>, vector<128x128xf32>, vector<8x128xf32> -> vector<8x128xf32>
    %c0_4 = arith.constant 0 : index
    %c0_5 = arith.constant 0 : index
    %6 = vector.load %arg4[%c0_4, %c0_5] : memref<1x128xf32, #tpu.memory_space<vmem>>, vector<1x128xf32>
    %7 = vector.broadcast %6 : vector<1x128xf32> to vector<8x128xf32>
    %8 = arith.addf %5, %7 : vector<8x128xf32>
    %cst_6 = arith.constant 5.000000e-01 : f32
    %9 = vector.broadcast %cst_6 : f32 to vector<8x128xf32>
    %10 = arith.mulf %9, %8 : vector<8x128xf32>
    %cst_7 = arith.constant 0.707106769 : f32
    %11 = vector.broadcast %cst_7 : f32 to vector<8x128xf32>
    %12 = arith.mulf %8, %11 : vector<8x128xf32>
    %13 = math.erf %12 : vector<8x128xf32>
    %cst_8 = arith.constant 1.000000e+00 : f32
    %14 = vector.broadcast %cst_8 : f32 to vector<8x128xf32>
    %15 = arith.addf %14, %13 : vector<8x128xf32>
    %16 = arith.mulf %10, %15 : vector<8x128xf32>
    %c0_9 = arith.constant 0 : index
    %c0_10 = arith.constant 0 : index
    %17 = vector.load %arg8[%c0_9, %c0_10] : memref<8x128xf32, #tpu.memory_space<vmem>>, vector<8x128xf32>
    %c0_11 = arith.constant 0 : index
    %c0_12 = arith.constant 0 : index
    %18 = vector.load %arg5[%c0_11, %c0_12] : memref<128x128xf32, #tpu.memory_space<vmem>>, vector<128x128xf32>
    %cst_13 = arith.constant dense<0.000000e+00> : vector<8x128xf32>
    %19 = tpu.matmul %16, %18, %cst_13 {dimension_numbers = #tpu.dot_dimension_numbers<[1], [0], [0], [1], [0, 0, 1, 1], [], []>} : vector<8x128xf32>, vector<128x128xf32>, vector<8x128xf32> -> vector<8x128xf32>
    %20 = arith.addf %17, %19 : vector<8x128xf32>
    %c0_14 = arith.constant 0 : index
    %c0_15 = arith.constant 0 : index
    %21 = vector.load %arg8[%c0_14, %c0_15] : memref<8x128xf32, #tpu.memory_space<vmem>>, vector<8x128xf32>
    tpu.vector_store %arg8[%c0_14, %c0_15], %20 {strides = array<i32>} : memref<8x128xf32, #tpu.memory_space<vmem>>, vector<8x128xf32>,
    %c0_i32_16 = arith.constant 0 : i32
    %22 = arith.cmpi eq, %arg1, %c0_i32_16 : i32
    %23 = arith.extui %22 : i1 to i32
    %c0_i32_17 = arith.constant 0 : i32
    %24 = arith.cmpi ne, %23, %c0_i32_17 : i32
    scf.if %24 {
      %c0_18 = arith.constant 0 : index
      %c0_19 = arith.constant 0 : index
      %25 = vector.load %arg8[%c0_18, %c0_19] : memref<8x128xf32, #tpu.memory_space<vmem>>, vector<8x128xf32>
      %c0_20 = arith.constant 0 : index
      %c0_21 = arith.constant 0 : index
      %26 = vector.load %arg6[%c0_20, %c0_21] : memref<1x128xf32, #tpu.memory_space<vmem>>, vector<1x128xf32>
      %27 = vector.broadcast %26 : vector<1x128xf32> to vector<8x128xf32>
      %28 = arith.addf %25, %27 : vector<8x128xf32>
      %c0_22 = arith.constant 0 : index
      %c0_23 = arith.constant 0 : index
      %29 = vector.load %arg7[%c0_22, %c0_23] : memref<8x128xf32, #tpu.memory_space<vmem>>, vector<8x128xf32>
      tpu.vector_store %arg7[%c0_22, %c0_23], %28 {strides = array<i32>} : memref<8x128xf32, #tpu.memory_space<vmem>>, vector<8x128xf32>,
    } else {
    }
    return
  }
  func.func @transform_0(%arg0: i32, %arg1: i32) -> (i32, i32) {
    %c0_i32 = arith.constant 0 : i32
    %c0_i32_0 = arith.constant 0 : i32
    return %arg0, %c0_i32 : i32, i32
  }
  func.func @transform_1(%arg0: i32, %arg1: i32) -> (i32, i32) {
    %c0_i32 = arith.constant 0 : i32
    %c0_i32_0 = arith.constant 0 : i32
    return %c0_i32, %arg1 : i32, i32
  }
  func.func @transform_2(%arg0: i32, %arg1: i32) -> (i32, i32) {
    %c0_i32 = arith.constant 0 : i32
    %c0_i32_0 = arith.constant 0 : i32
    return %c0_i32, %arg1 : i32, i32
  }
  func.func @transform_3(%arg0: i32, %arg1: i32) -> (i32, i32) {
    %c0_i32 = arith.constant 0 : i32
    %c0_i32_0 = arith.constant 0 : i32
    return %arg1, %c0_i32 : i32, i32
  }
  func.func @transform_4(%arg0: i32, %arg1: i32) -> (i32, i32) {
    %c0_i32 = arith.constant 0 : i32
    %c0_i32_0 = arith.constant 0 : i32
    %c0_i32_1 = arith.constant 0 : i32
    return %c0_i32, %c0_i32_0 : i32, i32
  }
  func.func @transform_5(%arg0: i32, %arg1: i32) -> (i32, i32) {
    %c0_i32 = arith.constant 0 : i32
    %c0_i32_0 = arith.constant 0 : i32
    return %arg0, %c0_i32 : i32, i32
  }
}

</mosaic_0001>

<llo_original>
// kernel: _mlp_forward_impl.1
$region0: #{_mlp_forward_impl.1}
  #allocation0 [shape = 'u32[]', space=smem, size = 0x4, offset = 0x4, fixed_abs, tag = 'smem constant byte address 0x4 - core index']
  #allocation1 [shape = 'u32[144,128]{1,0:T(1,128)}', space=vmem, size = 0x12000, scoped, tag = 'internal scratch']
  #allocation2 [shape = 'f32[8,128]{1,0:T(8,128)}', space=vmem, size = 0x1000, scoped, tag = 'scratch operand']
  %s0 = inlined_call_operand.vmem [shape: f32[16,128], index: 0, kind: input, shape index: {}]
  %s1 = inlined_call_operand.hbm [shape: f32[128,128], index: 1, kind: input, shape index: {}]
  %s2 = inlined_call_operand.vmem [shape: f32[1,128], index: 2, kind: input, shape index: {}]
  %s3 = inlined_call_operand.hbm [shape: f32[128,128], index: 3, kind: input, shape index: {}]
  %s4 = inlined_call_operand.vmem [shape: f32[1,128], index: 4, kind: input, shape index: {}]
  %s5 = inlined_call_operand.vmem [shape: f32[16,128], index: 5, kind: output, shape index: {}]
  %s6 = sld [smem:[#allocation0]]
  $region69: #{_mlp_forward_impl.1} parent=0
    _
  %s8 = ssub.s32 1, %s6
  %s9 = scalar_select 0, %s8, %s6
  $region1: #{_mlp_forward_impl.1} parent=0
    #allocation3 [shape = 'u8[65536]{0}', space=vmem, size = 0x10000, scoped, tag = 'input window, operand 1, single buffered']
    #allocation4 [shape = 's32[2]{0}', space=sflag, size = 0x8, scoped, tag = 'scoped memory for _mlp_forward_impl.1']
    #allocation5 [shape = 'u8[65536]{0}', space=vmem, size = 0x10000, scoped, tag = 'input window, operand 3, single buffered']
    #allocation6 [shape = 's32[1]{0}', space=sflag, size = 0x4, scoped, tag = 'scoped memory for _mlp_forward_impl.1']
    %10 = vsyncpa [#allocation4], 0
    %11 = vsyncpa [#allocation6], 0
    loop: start=0, step=1, limit=4
    $region2: #{_mlp_forward_impl.1} parent=1 // loop_pre_header
      _
    $region3: #{_mlp_forward_impl.1} parent=1 // loop_header
      %s13 = sphi 0, %s17
      %p14 = scmp.ge.s32.totalorder %s13, 4
      %s20 = sphi 0, %s32
      %s21 = sphi 0, %s28
      %s22 = sphi 0, %s20
      %s23 = sphi 0, %s21
      %s24 = sphi 0, %s22
      %s25 = sphi 0, %s23
      %s35 = sphi 0, %s37
      %s38 = sphi 0, %s35
      %s39 = sphi 0, %s38
      %s55 = sphi 0, %s39
      %s61 = sphi 0, %s63
      %s64 = sphi 0, %s61
      %s65 = sphi 0, %s64
      %s81 = sphi 0, %s65
      %s87 = sphi 0, %s89
      %s90 = sphi 0, %s87
      %s91 = sphi 0, %s90
      %s107 = sphi 0, %s91
      %s113 = sphi 0, %s115
      %s116 = sphi 0, %s113
      %s117 = sphi 0, %s116
      %s133 = sphi 0, %s117
      %s137 = sphi 0, %s137
      %s139 = sphi 0, %s137
      %s140 = sphi 0, %s139
      %s154 = sphi 0, %s140
      %s160 = sphi 0, %s162
      %s163 = sphi 0, %s160
      %s164 = sphi 0, %s163
      %s180 = sphi 0, %s164
    $region4: #{_mlp_forward_impl.1} parent=1 // loop_header_branch
      %16 = sbr.rel (%p14) target = $region8
    $region5: #{_mlp_forward_impl.1} parent=1 // loop_body
      %s18 = ssub.s32 %s13, 1
      %s19 = ssub.s32 %s13, 2
      %s26 = sadd.s32 1, %s21
      %p27 = scmp.ge.s32.totalorder %s26, 1
      %s28 = scalar_select %p27, 0, %s26
      %s29 = sadd.s32 1, %s20
      %s30 = scalar_select %p27, %s29, %s20
      %p31 = scmp.ge.s32.totalorder %s30, 2
      %s32 = scalar_select %p31, 0, %s30
      %s33 = ssub.s32 %s20, %s32
      %p34 = scmp.eq.s32.totalorder %s33, 0
      %s36 = sadd.s32 %s35, 1
      %s37 = scalar_select %p34, %s35, %s36
      %p40 = pneg %p34
      %p41 = scmp.eq.s32.totalorder %s13, 1
      %p42 = por %p40, %p41
      %p43 = scmp.ne.s32.totalorder %s35, %s38
      %p44 = scmp.eq.s32.totalorder %s13, 0
      %p45 = por %p43, %p44
      %p46 = scmp.ne.s32.totalorder %s35, %s38
      %p47 = scmp.eq.s32.totalorder %s18, 1
      %p48 = por %p46, %p47
      %p49 = scmp.ne.s32.totalorder %s38, %s39
      %p50 = scmp.eq.s32.totalorder %s18, 0
      %p51 = por %p49, %p50
      %p52 = scmp.ne.s32.totalorder %s38, %s39
      %p53 = scmp.eq.s32.totalorder %s19, 1
      %p54 = por %p52, %p53
      %p56 = scmp.ne.s32.totalorder %s39, %s55
      %p57 = scmp.eq.s32.totalorder %s19, 0
      %p58 = por %p56, %p57
      %s59 = ssub.s32 %s21, %s28
      %p60 = scmp.eq.s32.totalorder %s59, 0
      %s62 = sadd.s32 %s61, 1
      %s63 = scalar_select %p60, %s61, %s62
      %p66 = pneg %p60
      %p67 = scmp.eq.s32.totalorder %s13, 1
      %p68 = por %p66, %p67
      %p69 = scmp.ne.s32.totalorder %s61, %s64
      %p70 = scmp.eq.s32.totalorder %s13, 0
      %p71 = por %p69, %p70
      %p72 = scmp.ne.s32.totalorder %s61, %s64
      %p73 = scmp.eq.s32.totalorder %s18, 1
      %p74 = por %p72, %p73
      %p75 = scmp.ne.s32.totalorder %s64, %s65
      %p76 = scmp.eq.s32.totalorder %s18, 0
      %p77 = por %p75, %p76
      %p78 = scmp.ne.s32.totalorder %s64, %s65
      %p79 = scmp.eq.s32.totalorder %s19, 1
      %p80 = por %p78, %p79
      %p82 = scmp.ne.s32.totalorder %s65, %s81
      %p83 = scmp.eq.s32.totalorder %s19, 0
      %p84 = por %p82, %p83
      %s85 = ssub.s32 %s21, %s28
      %p86 = scmp.eq.s32.totalorder %s85, 0
      %s88 = sadd.s32 %s87, 1
      %s89 = scalar_select %p86, %s87, %s88
      %p92 = pneg %p86
      %p93 = scmp.eq.s32.totalorder %s13, 1
      %p94 = por %p92, %p93
      %p95 = scmp.ne.s32.totalorder %s87, %s90
      %p96 = scmp.eq.s32.totalorder %s13, 0
      %p97 = por %p95, %p96
      %p98 = scmp.ne.s32.totalorder %s87, %s90
      %p99 = scmp.eq.s32.totalorder %s18, 1
      %p100 = por %p98, %p99
      %p101 = scmp.ne.s32.totalorder %s90, %s91
      %p102 = scmp.eq.s32.totalorder %s18, 0
      %p103 = por %p101, %p102
      %p104 = scmp.ne.s32.totalorder %s90, %s91
      %p105 = scmp.eq.s32.totalorder %s19, 1
      %p106 = por %p104, %p105
      %p108 = scmp.ne.s32.totalorder %s91, %s107
      %p109 = scmp.eq.s32.totalorder %s19, 0
      %p110 = por %p108, %p109
      %s111 = ssub.s32 %s21, %s28
      %p112 = scmp.eq.s32.totalorder %s111, 0
      %s114 = sadd.s32 %s113, 1
      %s115 = scalar_select %p112, %s113, %s114
      %p118 = pneg %p112
      %p119 = scmp.eq.s32.totalorder %s13, 1
      %p120 = por %p118, %p119
      %p121 = scmp.ne.s32.totalorder %s113, %s116
      %p122 = scmp.eq.s32.totalorder %s13, 0
      %p123 = por %p121, %p122
      %p124 = scmp.ne.s32.totalorder %s113, %s116
      %p125 = scmp.eq.s32.totalorder %s18, 1
      %p126 = por %p124, %p125
      %p127 = scmp.ne.s32.totalorder %s116, %s117
      %p128 = scmp.eq.s32.totalorder %s18, 0
      %p129 = por %p127, %p128
      %p130 = scmp.ne.s32.totalorder %s116, %s117
      %p131 = scmp.eq.s32.totalorder %s19, 1
      %p132 = por %p130, %p131
      %p134 = scmp.ne.s32.totalorder %s117, %s133
      %p135 = scmp.eq.s32.totalorder %s19, 0
      %p136 = por %p134, %p135
      %s138 = sadd.s32 %s137, 1
      %p141 = scmp.eq.s32.totalorder %s13, 1
      %p142 = scmp.ne.s32.totalorder %s137, %s139
      %p143 = scmp.eq.s32.totalorder %s13, 0
      %p144 = por %p142, %p143
      %p145 = scmp.ne.s32.totalorder %s137, %s139
      %p146 = scmp.eq.s32.totalorder %s18, 1
      %p147 = por %p145, %p146
      %p148 = scmp.ne.s32.totalorder %s139, %s140
      %p149 = scmp.eq.s32.totalorder %s18, 0
      %p150 = por %p148, %p149
      %p151 = scmp.ne.s32.totalorder %s139, %s140
      %p152 = scmp.eq.s32.totalorder %s19, 1
      %p153 = por %p151, %p152
      %p155 = scmp.ne.s32.totalorder %s140, %s154
      %p156 = scmp.eq.s32.totalorder %s19, 0
      %p157 = por %p155, %p156
      %s158 = ssub.s32 %s20, %s32
      %p159 = scmp.eq.s32.totalorder %s158, 0
      %s161 = sadd.s32 %s160, 1
      %s162 = scalar_select %p159, %s160, %s161
      %p165 = pneg %p159
      %p166 = scmp.eq.s32.totalorder %s13, 1
      %p167 = por %p165, %p166
      %p168 = scmp.ne.s32.totalorder %s160, %s163
      %p169 = scmp.eq.s32.totalorder %s13, 0
      %p170 = por %p168, %p169
      %p171 = scmp.ne.s32.totalorder %s160, %s163
      %p172 = scmp.eq.s32.totalorder %s18, 1
      %p173 = por %p171, %p172
      %p174 = scmp.ne.s32.totalorder %s163, %s164
      %p175 = scmp.eq.s32.totalorder %s18, 0
      %p176 = por %p174, %p175
      %p177 = scmp.ne.s32.totalorder %s163, %s164
      %p178 = scmp.eq.s32.totalorder %s19, 1
      %p179 = por %p177, %p178
      %p181 = scmp.ne.s32.totalorder %s164, %s180
      %p182 = scmp.eq.s32.totalorder %s19, 0
      %p183 = por %p181, %p182
      %p184 = scmp.le.s32.totalorder 1, %s13
      %p185 = scmp.lt.s32.totalorder %s13, 3
      %p186 = pnand %p184, %p185
      %p187 = pneg %p186
      // Predicated region
      $region9: #{_mlp_forward_impl.1} parent=5 // pred_check
        _
      $region10: #{_mlp_forward_impl.1} parent=5 // pred_check_branch
        %189 = sbr.rel (%p186) target = $region12
      $region11: #{_mlp_forward_impl.1} parent=5 // pred_region
        %s190 = ssub.s32 %s13, 1
        // Predicated region
        $region13: #{_mlp_forward_impl.1} parent=11 // pred_check
          %p191 = pneg %p77
        $region14: #{_mlp_forward_impl.1} parent=11 // pred_check_branch
          %193 = sbr.rel (%p191) target = $region16
        $region15: #{_mlp_forward_impl.1} parent=11 // pred_region
          %s195 = ssub.s32 2048, 2048
          %196 = vsyncadd [#allocation4], %s195
          %s197 = smul.addr %s23, 128
          %s198 = scalar_lea.hbm %s1, %s197
          %s199 = sshll.u32 [#allocation3], 4
          %s200 = int_to_ptr.vmem [resolvable:$true] %s199
          %205 = dma.hbm_to_vmem [thread:$0]  %s198, 2048, %s200, [#allocation4], 128, 128, 8
        $region16: #{_mlp_forward_impl.1} parent=11 // pred_fallthru
          _
        // Predicated region
        $region17: #{_mlp_forward_impl.1} parent=11 // pred_check
          %p206 = pneg %p103
        $region18: #{_mlp_forward_impl.1} parent=11 // pred_check_branch
          %208 = sbr.rel (%p206) target = $region20
        $region19: #{_mlp_forward_impl.1} parent=11 // pred_region
          %p209 = scmp.lt.s32.totalorder %s23, 0
          %s210 = scalar_select %p209, %s23, 0
          %s211 = scalar_lea.vmem %s2, %s210
        $region20: #{_mlp_forward_impl.1} parent=11 // pred_fallthru
          _
        // Predicated region
        $region21: #{_mlp_forward_impl.1} parent=11 // pred_check
          %p212 = pneg %p129
        $region22: #{_mlp_forward_impl.1} parent=11 // pred_check_branch
          %214 = sbr.rel (%p212) target = $region24
        $region23: #{_mlp_forward_impl.1} parent=11 // pred_region
          %s215 = smul.u32 16, %s23
          %s217 = ssub.s32 2048, 2048
          %218 = vsyncadd [#allocation6], %s217
          %s219 = smul.addr %s215, 128
          %s220 = scalar_lea.hbm %s3, %s219
          %s221 = sshll.u32 [#allocation5], 4
          %s222 = int_to_ptr.vmem [resolvable:$true] %s221
          %227 = dma.hbm_to_vmem [thread:$0]  %s220, 2048, %s222, [#allocation6], 128, 128, 8
        $region24: #{_mlp_forward_impl.1} parent=11 // pred_fallthru
          _
        // Predicated region
        $region25: #{_mlp_forward_impl.1} parent=11 // pred_check
          %p228 = pneg %p150
        $region26: #{_mlp_forward_impl.1} parent=11 // pred_check_branch
          %230 = sbr.rel (%p228) target = $region28
        $region27: #{_mlp_forward_impl.1} parent=11 // pred_region
          _
        $region28: #{_mlp_forward_impl.1} parent=11 // pred_fallthru
          _
      $region12: #{_mlp_forward_impl.1} parent=5 // pred_fallthru
        _
      %p231 = scmp.lt.s32.totalorder %s13, 2
      // Predicated region
      $region29: #{_mlp_forward_impl.1} parent=5 // pred_check
        %p232 = pneg %p231
      $region30: #{_mlp_forward_impl.1} parent=5 // pred_check_branch
        %234 = sbr.rel (%p232) target = $region32
      $region31: #{_mlp_forward_impl.1} parent=5 // pred_region
        // Predicated region
        $region33: #{_mlp_forward_impl.1} parent=31 // pred_check
          %p235 = pneg %p45
        $region34: #{_mlp_forward_impl.1} parent=31 // pred_check_branch
          %237 = sbr.rel (%p235) target = $region36
        $region35: #{_mlp_forward_impl.1} parent=31 // pred_region
          %p238 = scmp.lt.s32.totalorder %s20, 1
          %s239 = scalar_select %p238, %s20, 1
          %s240 = smul.addr %s239, 8
          %s241 = scalar_lea.vmem %s0, %s240
        $region36: #{_mlp_forward_impl.1} parent=31 // pred_fallthru
          _
      $region32: #{_mlp_forward_impl.1} parent=5 // pred_fallthru
        _
      %p242 = scmp.le.s32.totalorder 1, %s13
      %p243 = scmp.lt.s32.totalorder %s13, 3
      %p244 = pnand %p242, %p243
      %p245 = pneg %p244
      // Predicated region
      $region37: #{_mlp_forward_impl.1} parent=5 // pred_check
        _
      $region38: #{_mlp_forward_impl.1} parent=5 // pred_check_branch
        %247 = sbr.rel (%p244) target = $region40
      $region39: #{_mlp_forward_impl.1} parent=5 // pred_region
        %s248 = ssub.s32 %s13, 1
        // Predicated region
        $region41: #{_mlp_forward_impl.1} parent=39 // pred_check
          %p249 = pneg %p77
        $region42: #{_mlp_forward_impl.1} parent=39 // pred_check_branch
          %251 = sbr.rel (%p249) target = $region44
        $region43: #{_mlp_forward_impl.1} parent=39 // pred_region
          %252 = dma.done [#allocation4], 2048
        $region44: #{_mlp_forward_impl.1} parent=39 // pred_fallthru
          _
        // Predicated region
        $region45: #{_mlp_forward_impl.1} parent=39 // pred_check
          %p253 = pneg %p129
        $region46: #{_mlp_forward_impl.1} parent=39 // pred_check_branch
          %255 = sbr.rel (%p253) target = $region48
        $region47: #{_mlp_forward_impl.1} parent=39 // pred_region
          %256 = dma.done [#allocation6], 2048
        $region48: #{_mlp_forward_impl.1} parent=39 // pred_fallthru
          _
        %p257 = scmp.lt.s32.totalorder %s22, 1
        %s258 = scalar_select %p257, %s22, 1
        %s259 = smul.addr %s258, 8
        %s260 = scalar_lea.vmem %s0, %s259
        %p261 = pneg %p51
        %p262 = pneg %p48
        %p263 = pneg %p77
        %p264 = pneg %p74
        %p265 = scmp.lt.s32.totalorder %s23, 0
        %s266 = scalar_select %p265, %s23, 0
        %s267 = scalar_lea.vmem %s2, %s266
        %p268 = pneg %p103
        %p269 = pneg %p100
        %p270 = pneg %p129
        %p271 = pneg %p126
        %p272 = pneg %p150
        %p273 = pneg %p147
        %p274 = pneg %p176
        %p275 = pneg %p173
        %p276 = scmp.lt.s32.totalorder %s22, 1
        %s277 = scalar_select %p276, %s22, 1
        %s278 = smul.addr %s277, 8
        %s279 = scalar_lea.vmem %s5, %s278
        %p280 = scmp.lt.s32.totalorder %s22, 1
        %s281 = scalar_select %p280, %s22, 1
        %s282 = smul.addr %s281, 8
        %s283 = scalar_lea.vmem %s0, %s282
        %p284 = scmp.lt.s32.totalorder %s23, 0
        %s285 = scalar_select %p284, %s23, 0
        %s286 = scalar_lea.vmem %s2, %s285
        %s287 = smul.u32 16, %s23
        %p288 = scmp.lt.s32.totalorder %s22, 1
        %s289 = scalar_select %p288, %s22, 1
        %s290 = smul.addr %s289, 8
        %s291 = scalar_lea.vmem %s5, %s290
        %p292 = scmp.eq.s32.totalorder %s23, 0
        // Predicated region
        $region49: #{_mlp_forward_impl.1} parent=39 // pred_check
          %p293 = pneg %p292
        $region50: #{_mlp_forward_impl.1} parent=39 // pred_check_branch
          %295 = sbr.rel (%p293) target = $region52
        $region51: #{_mlp_forward_impl.1} parent=39 // pred_region
          %296 = vst [vmem:[#allocation2] sm:$0xff] 0.0
        $region52: #{_mlp_forward_impl.1} parent=39 // pred_fallthru
          _
        %v297 = vld [vmem:[%s283] sm:$0xff]
        %v298 = vld [vmem:[#allocation3] sm:$0xff]
        %v299 = vld [vmem:[#allocation3 + $0x8] sm:$0xff]
        %v300 = vld [vmem:[#allocation3 + $0x10] sm:$0xff]
        %v301 = vld [vmem:[#allocation3 + $0x18] sm:$0xff]
        %v302 = vld [vmem:[#allocation3 + $0x20] sm:$0xff]
        %v303 = vld [vmem:[#allocation3 + $0x28] sm:$0xff]
        %v304 = vld [vmem:[#allocation3 + $0x30] sm:$0xff]
        %v305 = vld [vmem:[#allocation3 + $0x38] sm:$0xff]
        %v306 = vld [vmem:[#allocation3 + $0x40] sm:$0xff]
        %v307 = vld [vmem:[#allocation3 + $0x48] sm:$0xff]
        %v308 = vld [vmem:[#allocation3 + $0x50] sm:$0xff]
        %v309 = vld [vmem:[#allocation3 + $0x58] sm:$0xff]
        %v310 = vld [vmem:[#allocation3 + $0x60] sm:$0xff]
        %v311 = vld [vmem:[#allocation3 + $0x68] sm:$0xff]
        %v312 = vld [vmem:[#allocation3 + $0x70] sm:$0xff]
        %v313 = vld [vmem:[#allocation3 + $0x78] sm:$0xff]
        %v314 = vld [vmem:[%s286] sm:$0x1]
        %v316 = vlaneseq
        %v317 = vshrl.u32 %v316, 7
        %v318 = vsub.s32 0, %v317
        %v319 = vrot.slane %v314, %v318
        %321 = vmatprep.subr.mxu0 0.0
        %322 = vmatpush1.msra.mxu0 %v298
        %323 = vmatprep.subr.mxu0 0.0
        %324 = vmatpush1.msra.mxu0 %v299
        %325 = vmatprep.subr.mxu0 0.0
        %326 = vmatpush1.msra.mxu0 %v300
        %327 = vmatprep.subr.mxu0 0.0
        %328 = vmatpush1.msra.mxu0 %v301
        %329 = vmatprep.subr.mxu0 0.0
        %330 = vmatpush1.msra.mxu0 %v302
        %331 = vmatprep.subr.mxu0 0.0
        %332 = vmatpush1.msra.mxu0 %v303
        %333 = vmatprep.subr.mxu0 0.0
        %334 = vmatpush1.msra.mxu0 %v304
        %335 = vmatprep.subr.mxu0 0.0
        %336 = vmatpush1.msra.mxu0 %v305
        %337 = vmatprep.subr.mxu0 0.0
        %338 = vmatpush1.msra.mxu0 %v306
        %339 = vmatprep.subr.mxu0 0.0
        %340 = vmatpush1.msra.mxu0 %v307
        %341 = vmatprep.subr.mxu0 0.0
        %342 = vmatpush1.msra.mxu0 %v308
        %343 = vmatprep.subr.mxu0 0.0
        %344 = vmatpush1.msra.mxu0 %v309
        %345 = vmatprep.subr.mxu0 0.0
        %346 = vmatpush1.msra.mxu0 %v310
        %347 = vmatprep.subr.mxu0 0.0
        %348 = vmatpush1.msra.mxu0 %v311
        %349 = vmatprep.subr.mxu0 0.0
        %350 = vmatpush1.msra.mxu0 %v312
        %351 = vmatprep.subr.mxu0 0.0
        %352 = vmatpush1.msra.mxu0 %v313
        %353 = vmatprep.subr.mxu0 0.0
        %354 = vmatpush1.msra.mxu0 0.0
        %355 = vmatprep.subr.mxu0 0.0
        %356 = vmatpush1.msra.mxu0 0.0
        %357 = vmatprep.subr.mxu0 0.0
        %358 = vmatpush1.msra.mxu0 0.0
        %359 = vmatprep.subr.mxu0 0.0
        %360 = vmatpush1.msra.mxu0 0.0
        %361 = vmatprep.subr.mxu0 0.0
        %362 = vmatpush1.msra.mxu0 0.0
        %363 = vmatprep.subr.mxu0 0.0
        %364 = vmatpush1.msra.mxu0 0.0
        %365 = vmatprep.subr.mxu0 0.0
        %366 = vmatpush1.msra.mxu0 0.0
        %367 = vmatprep.subr.mxu0 0.0
        %368 = vmatpush1.msra.mxu0 0.0
        %369 = vmatprep.subr.mxu0 0.0
        %370 = vmatpush1.msra.mxu0 0.0
        %371 = vmatprep.subr.mxu0 0.0
        %372 = vmatpush1.msra.mxu0 0.0
        %373 = vmatprep.subr.mxu0 0.0
        %374 = vmatpush1.msra.mxu0 0.0
        %375 = vmatprep.subr.mxu0 0.0
        %376 = vmatpush1.msra.mxu0 0.0
        %377 = vmatprep.subr.mxu0 0.0
        %378 = vmatpush1.msra.mxu0 0.0
        %379 = vmatprep.subr.mxu0 0.0
        %380 = vmatpush1.msra.mxu0 0.0
        %381 = vmatprep.subr.mxu0 0.0
        %382 = vmatpush1.msra.mxu0 0.0
        %383 = vmatprep.subr.mxu0 0.0
        %384 = vmatpush1.msra.mxu0 0.0
        %385 = vmatprep.mubr.f32.mxu0 0.0
        %386 = vmatmul.mubr.f32.gmra.mrb[0].mxu0 %v297
        %v387 = vpop.f32.mrb[0].mxu0
        %v388 = vadd.f32 %v319, %v387
        %v389 = vpop.f32.mrb[0].mxu0
        %390 = vdwg.mxu0
        %v391 = vmul.f32 %v388, 0.5
        %v392 = vmul.f32 %v388, 0.70710677
        %v393 = verf.f32.pop %v392
        %v394 = vadd.f32 %v393, 1.0
        %v395 = vmul.f32 %v391, %v394
        %v396 = vld [vmem:[#allocation2] sm:$0xff]
        %v397 = vld [vmem:[#allocation5] sm:$0xff]
        %v398 = vld [vmem:[#allocation5 + $0x8] sm:$0xff]
        %v399 = vld [vmem:[#allocation5 + $0x10] sm:$0xff]
        %v400 = vld [vmem:[#allocation5 + $0x18] sm:$0xff]
        %v401 = vld [vmem:[#allocation5 + $0x20] sm:$0xff]
        %v402 = vld [vmem:[#allocation5 + $0x28] sm:$0xff]
        %v403 = vld [vmem:[#allocation5 + $0x30] sm:$0xff]
        %v404 = vld [vmem:[#allocation5 + $0x38] sm:$0xff]
        %v405 = vld [vmem:[#allocation5 + $0x40] sm:$0xff]
        %v406 = vld [vmem:[#allocation5 + $0x48] sm:$0xff]
        %v407 = vld [vmem:[#allocation5 + $0x50] sm:$0xff]
        %v408 = vld [vmem:[#allocation5 + $0x58] sm:$0xff]
        %v409 = vld [vmem:[#allocation5 + $0x60] sm:$0xff]
        %v410 = vld [vmem:[#allocation5 + $0x68] sm:$0xff]
        %v411 = vld [vmem:[#allocation5 + $0x70] sm:$0xff]
        %v412 = vld [vmem:[#allocation5 + $0x78] sm:$0xff]
        %413 = vmatprep.subr.mxu0 0.0
        %414 = vmatpush1.msra.mxu0 %v397
        %415 = vmatprep.subr.mxu0 0.0
        %416 = vmatpush1.msra.mxu0 %v398
        %417 = vmatprep.subr.mxu0 0.0
        %418 = vmatpush1.msra.mxu0 %v399
        %419 = vmatprep.subr.mxu0 0.0
        %420 = vmatpush1.msra.mxu0 %v400
        %421 = vmatprep.subr.mxu0 0.0
        %422 = vmatpush1.msra.mxu0 %v401
        %423 = vmatprep.subr.mxu0 0.0
        %424 = vmatpush1.msra.mxu0 %v402
        %425 = vmatprep.subr.mxu0 0.0
        %426 = vmatpush1.msra.mxu0 %v403
        %427 = vmatprep.subr.mxu0 0.0
        %428 = vmatpush1.msra.mxu0 %v404
        %429 = vmatprep.subr.mxu0 0.0
        %430 = vmatpush1.msra.mxu0 %v405
        %431 = vmatprep.subr.mxu0 0.0
        %432 = vmatpush1.msra.mxu0 %v406
        %433 = vmatprep.subr.mxu0 0.0
        %434 = vmatpush1.msra.mxu0 %v407
        %435 = vmatprep.subr.mxu0 0.0
        %436 = vmatpush1.msra.mxu0 %v408
        %437 = vmatprep.subr.mxu0 0.0
        %438 = vmatpush1.msra.mxu0 %v409
        %439 = vmatprep.subr.mxu0 0.0
        %440 = vmatpush1.msra.mxu0 %v410
        %441 = vmatprep.subr.mxu0 0.0
        %442 = vmatpush1.msra.mxu0 %v411
        %443 = vmatprep.subr.mxu0 0.0
        %444 = vmatpush1.msra.mxu0 %v412
        %445 = vmatprep.subr.mxu0 0.0
        %446 = vmatpush1.msra.mxu0 0.0
        %447 = vmatprep.subr.mxu0 0.0
        %448 = vmatpush1.msra.mxu0 0.0
        %449 = vmatprep.subr.mxu0 0.0
        %450 = vmatpush1.msra.mxu0 0.0
        %451 = vmatprep.subr.mxu0 0.0
        %452 = vmatpush1.msra.mxu0 0.0
        %453 = vmatprep.subr.mxu0 0.0
        %454 = vmatpush1.msra.mxu0 0.0
        %455 = vmatprep.subr.mxu0 0.0
        %456 = vmatpush1.msra.mxu0 0.0
        %457 = vmatprep.subr.mxu0 0.0
        %458 = vmatpush1.msra.mxu0 0.0
        %459 = vmatprep.subr.mxu0 0.0
        %460 = vmatpush1.msra.mxu0 0.0
        %461 = vmatprep.subr.mxu0 0.0
        %462 = vmatpush1.msra.mxu0 0.0
        %463 = vmatprep.subr.mxu0 0.0
        %464 = vmatpush1.msra.mxu0 0.0
        %465 = vmatprep.subr.mxu0 0.0
        %466 = vmatpush1.msra.mxu0 0.0
        %467 = vmatprep.subr.mxu0 0.0
        %468 = vmatpush1.msra.mxu0 0.0
        %469 = vmatprep.subr.mxu0 0.0
        %470 = vmatpush1.msra.mxu0 0.0
        %471 = vmatprep.subr.mxu0 0.0
        %472 = vmatpush1.msra.mxu0 0.0
        %473 = vmatprep.subr.mxu0 0.0
        %474 = vmatpush1.msra.mxu0 0.0
        %475 = vmatprep.subr.mxu0 0.0
        %476 = vmatpush1.msra.mxu0 0.0
        %477 = vmatprep.mubr.f32.mxu0 0.0
        %478 = vmatmul.mubr.f32.gmra.mrb[0].mxu0 %v395
        %v479 = vpop.f32.mrb[0].mxu0
        %v480 = vadd.f32 0.0, %v479
        %v481 = vpop.f32.mrb[0].mxu0
        %482 = vdwg.mxu0
        %v483 = vadd.f32 %v396, %v480
        %484 = vst [vmem:[#allocation2] sm:$0xff] %v483
        // Predicated region
        $region53: #{_mlp_forward_impl.1} parent=39 // pred_check
          %p485 = pneg %p292
        $region54: #{_mlp_forward_impl.1} parent=39 // pred_check_branch
          %487 = sbr.rel (%p485) target = $region56
        $region55: #{_mlp_forward_impl.1} parent=39 // pred_region
          %v488 = vld [vmem:[#allocation2] sm:$0xff]
          %v489 = vld [vmem:[%s4] sm:$0x1]
          %v491 = vlaneseq
          %v492 = vshrl.u32 %v491, 7
          %v493 = vsub.s32 0, %v492
          %v494 = vrot.slane %v489, %v493
          %v496 = vadd.f32 %v488, %v494
          %497 = vst [vmem:[%s291] sm:$0xff] %v496
        $region56: #{_mlp_forward_impl.1} parent=39 // pred_fallthru
          _
        %p498 = scmp.lt.s32.totalorder %s22, 1
        %s499 = scalar_select %p498, %s22, 1
        %s500 = smul.addr %s499, 8
        %s501 = scalar_lea.vmem %s5, %s500
        // Predicated region
        $region57: #{_mlp_forward_impl.1} parent=39 // pred_check
          %p502 = pneg %p173
        $region58: #{_mlp_forward_impl.1} parent=39 // pred_check_branch
          %504 = sbr.rel (%p502) target = $region60
        $region59: #{_mlp_forward_impl.1} parent=39 // pred_region
          _
        $region60: #{_mlp_forward_impl.1} parent=39 // pred_fallthru
          _
      $region40: #{_mlp_forward_impl.1} parent=5 // pred_fallthru
        _
      %p505 = scmp.le.s32.totalorder 2, %s13
      // Predicated region
      $region61: #{_mlp_forward_impl.1} parent=5 // pred_check
        %p506 = pneg %p505
      $region62: #{_mlp_forward_impl.1} parent=5 // pred_check_branch
        %508 = sbr.rel (%p506) target = $region64
      $region63: #{_mlp_forward_impl.1} parent=5 // pred_region
        %s509 = ssub.s32 %s13, 2
        // Predicated region
        $region65: #{_mlp_forward_impl.1} parent=63 // pred_check
          %p510 = pneg %p179
        $region66: #{_mlp_forward_impl.1} parent=63 // pred_check_branch
          %512 = sbr.rel (%p510) target = $region68
        $region67: #{_mlp_forward_impl.1} parent=63 // pred_region
          %p513 = scmp.lt.s32.totalorder %s24, 1
          %s514 = scalar_select %p513, %s24, 1
          %s515 = smul.addr %s514, 8
          %s516 = scalar_lea.vmem %s5, %s515
        $region68: #{_mlp_forward_impl.1} parent=63 // pred_fallthru
          _
      $region64: #{_mlp_forward_impl.1} parent=5 // pred_fallthru
        _
    $region6: #{_mlp_forward_impl.1} parent=1 // loop_footer
      %s17 = sadd.s32 1, %s13
    $region7: #{_mlp_forward_impl.1} parent=1 // loop_footer_branch
      %12 = sbr.rel target = $region3
    $region8: #{_mlp_forward_impl.1} parent=1 // loop_exit
      _
    %517 = vsyncpa [#allocation4], 1
    %s518 = scalar_lea.sflag [#allocation4], 1
    %519 = vsyncpa %s518, 1
    %520 = vsyncpa [#allocation6], 1

</llo_original>
